<compile_context>
chip_gen: v5e
topology: v5e:2x2
jax: 0.10.0
libtpu: 0.0.40
codegen_flags: <defaults>
</compile_context>

<pallas_src>
import functools

import jax
import jax.numpy as jnp
from jax.experimental import pallas as pl
from jax.experimental.pallas import tpu as pltpu

_LANES = 128
_SUBLANES = 8
_TARGET_BLOCK_ELEMS = 1 << 20      # ~4 MiB per f32 input block (review: 2-8 MiB)


def _statistic_relu_kernel(x_ref, relu_ref, stats_ref, *, numel0):
    """One grid step: ReLU a (row_tile, width) block and emit partial statistics.

    stats_ref is an (8, 128) f32 tile; lanes 0..3 (same value on every sublane) hold
    [count(>1e-4), sum, sum_of_squares, paraN_partial] for this block.
    """
    x = x_ref[...].astype(jnp.float32)
    r = jnp.maximum(x, 0.0)                       # ReLU
    relu_ref[...] = r.astype(relu_ref.dtype)

    block_rows, width = r.shape
    pos = r > 1e-4                                # == input.gt(0.0001) after ReLU
    rp = jnp.where(pos, r, 0.0)
    cnt = jnp.sum(jnp.where(pos, 1.0, 0.0))
    s1 = jnp.sum(rp)
    s2 = jnp.sum(rp * rp)

    # paraN: elements of the *first batch slice* with relu(x) > -1.
    # Global flat (row-major) index of each element in this block.
    # (int32 indexing: assumes < 2**31 total elements.)
    base = pl.program_id(0) * (block_rows * width)
    row_i = jax.lax.broadcasted_iota(jnp.int32, r.shape, 0)
    col_i = jax.lax.broadcasted_iota(jnp.int32, r.shape, 1)
    flat_i = base + row_i * width + col_i
    para = jnp.sum(jnp.where((flat_i < numel0) & (r > -1.0), 1.0, 0.0))

    lane = jax.lax.broadcasted_iota(jnp.int32, (_SUBLANES, _LANES), 1)
    stats_ref[...] = jnp.where(
        lane == 0, cnt,
        jnp.where(lane == 1, s1,
                  jnp.where(lane == 2, s2,
                            jnp.where(lane == 3, para, 0.0))))


class StatisticReLU:
    """JAX/Pallas equivalent of the PyTorch StatisticReLU module (forward pass)."""

    def __init__(self, clip_val=6, inplace=False):
        self.inplace = inplace
        self.clampv = clip_val / 3               # kept for parity with the module; unused
        # nn.Parameter buffers -> functional state held on the wrapper object.
        self.statis1 = jnp.float32(0.0)
        self.statis2 = jnp.float32(0.0)
        self.statisN = jnp.float32(0.0)
        self.paraN = jnp.int32(0)

    def __call__(self, x):
        orig_shape = x.shape
        n = x.size
        numel0 = n // orig_shape[0]              # number of elements in input[0]

        # ---- lane-dense 2D view -------------------------------------------------
        # Pick the widest lane dim that divides n (no padding); 128 is the fallback
        # and then only the final partial row is padded.
        width = _LANES
        for w in (1024, 512, 256, 128):
            if n % w == 0:
                width = w
                break
        rows = -(-n // width)

        # ---- row tiling: ~4 MiB blocks; never collapse to tiny tiles ------------
        target_rows = max(_SUBLANES, _TARGET_BLOCK_ELEMS // width)
        if rows <= target_rows:
            row_tile = rows                      # single full-array block (tiny inputs)
            grid_rows = rows
        else:
            row_tile = max(_SUBLANES, (target_rows // _SUBLANES) * _SUBLANES)
            grid_rows = -(-rows // row_tile) * row_tile   # pad rows up to tile multiple

        flat = x.reshape(-1)
        pad = grid_rows * width - n
        if pad:
            # Zero padding is statistics-neutral: relu(0)=0 fails the >1e-4 test and
            # padded flat indices are >= numel0, so paraN is unaffected.
            flat = jnp.pad(flat, (0, pad))
        x2d = flat.reshape(grid_rows, width)
        num_blocks = grid_rows // row_tile

        kernel = functools.partial(_statistic_relu_kernel, numel0=numel0)

        relu2d, stats2d = pl.pallas_call(
            kernel,
            out_shape=(
                jax.ShapeDtypeStruct((grid_rows, width), x.dtype),
                jax.ShapeDtypeStruct((num_blocks * _SUBLANES, _LANES), jnp.float32),
            ),
            grid_spec=pltpu.PrefetchScalarGridSpec(
                num_scalar_prefetch=0,
                grid=(num_blocks,),
                in_specs=[pl.BlockSpec((row_tile, width), lambda i: (i, 0))],
                out_specs=[
                    pl.BlockSpec((row_tile, width), lambda i: (i, 0)),
                    pl.BlockSpec((_SUBLANES, _LANES), lambda i: (i, 0)),
                ],
            ),
            compiler_params=pltpu.CompilerParams(
                dimension_semantics=("parallel",),
                vmem_limit_bytes=48 * 1024 * 1024,
            ),
            input_output_aliases={0: 0} if self.inplace else {},
        )(x2d)

        # Tiny cross-block reduction of the per-block partials (done in XLA so the
        # grid axis stays "parallel" and megacore-shardable on v7x).
        totals = stats2d.reshape(num_blocks, _SUBLANES, _LANES)[:, 0, :].sum(axis=0)
        self.statisN = self.statisN + totals[0]
        self.statis1 = self.statis1 + totals[1]
        self.statis2 = self.statis2 + totals[2]
        self.paraN = totals[3].astype(jnp.int32)   # re-assigned each call, like the module

        out = relu2d.reshape(-1)[:n] if pad else relu2d
        return out.reshape(orig_shape)


def _reference_stats(x):
    r = jnp.maximum(x.astype(jnp.float32), 0.0)
    mask = r > 1e-4
    cnt = jnp.sum(mask.astype(jnp.float32))
    s1 = jnp.sum(jnp.where(mask, r, 0.0))
    s2 = jnp.sum(jnp.where(mask, r * r, 0.0))
    para = jnp.sum((r[0] > -1.0).astype(jnp.int32))
    return r.astype(x.dtype), cnt, s1, s2, para


if __name__ == "__main__":
    key = jax.random.PRNGKey(0)
    # NCHW activation tensor, like a conv feature map.
    x = jax.random.normal(key, (2, 4, 16, 16), dtype=jnp.float32) * 4.0

    mod = StatisticReLU(clip_val=6, inplace=False)
    out = mod(x)
    out = jax.block_until_ready(out)

    r_ref, cnt_ref, s1_ref, s2_ref, para_ref = _reference_stats(x)
    assert out.shape == x.shape and out.dtype == x.dtype
    assert jnp.allclose(out, r_ref, atol=1e-6), "relu output mismatch"
    assert jnp.allclose(mod.statisN, cnt_ref, rtol=0, atol=0.5), "statisN mismatch"
    assert jnp.allclose(mod.statis1, s1_ref, rtol=1e-5, atol=1e-3), "statis1 mismatch"
    assert jnp.allclose(mod.statis2, s2_ref, rtol=1e-5, atol=1e-2), "statis2 mismatch"
    assert int(mod.paraN) == int(para_ref), "paraN mismatch"

    # Second call: running statistics accumulate across calls (paraN is re-assigned).
    out2 = jax.block_until_ready(mod(x))
    assert jnp.allclose(mod.statisN, 2.0 * cnt_ref, rtol=0, atol=0.5)
    assert jnp.allclose(mod.statis1, 2.0 * s1_ref, rtol=1e-5, atol=1e-3)
    assert int(mod.paraN) == int(para_ref)

    print("KERNEL_OK")
</pallas_src>

<mosaic_0001>
module attributes {stable_mosaic.version = 11 : i64} {
  func.func @_statistic_relu_kernel(%arg0: i32, %arg1: memref<2x1024xf32, #tpu.memory_space<vmem>>, %arg2: memref<2x1024xf32, #tpu.memory_space<vmem>>, %arg3: memref<8x128xf32, #tpu.memory_space<vmem>>) attributes {dimension_semantics = [#tpu.dimension_semantics<parallel>], iteration_bounds = array<i64: 1>, scalar_prefetch = 0 : i64, scratch_operands = 0 : i64, tpu.core_type = #tpu.core_type<tc>, window_params = [{transform_indices = @transform_0, window_bounds = array<i64: 2, 1024>}, {transform_indices = @transform_1, window_bounds = array<i64: 2, 1024>}, {transform_indices = @transform_2, window_bounds = array<i64: 8, 128>}]} {
    %c0 = arith.constant 0 : index
    %c0_0 = arith.constant 0 : index
    %0 = vector.load %arg1[%c0, %c0_0] : memref<2x1024xf32, #tpu.memory_space<vmem>>, vector<2x1024xf32>
    %cst = arith.constant 0.000000e+00 : f32
    %1 = vector.broadcast %cst : f32 to vector<2x1024xf32>
    %2 = arith.maximumf %0, %1 : vector<2x1024xf32>
    %c0_1 = arith.constant 0 : index
    %c0_2 = arith.constant 0 : index
    %3 = vector.load %arg2[%c0_1, %c0_2] : memref<2x1024xf32, #tpu.memory_space<vmem>>, vector<2x1024xf32>
    tpu.vector_store %arg2[%c0_1, %c0_2], %2 {strides = array<i32>} : memref<2x1024xf32, #tpu.memory_space<vmem>>, vector<2x1024xf32>,
    %cst_3 = arith.constant 9.99999974E-5 : f32
    %4 = vector.broadcast %cst_3 : f32 to vector<2x1024xf32>
    %5 = arith.cmpf ogt, %2, %4 : vector<2x1024xf32>
    %cst_4 = arith.constant 0.000000e+00 : f32
    %6 = vector.broadcast %cst_4 : f32 to vector<2x1024xf32>
    %7 = arith.select %5, %2, %6 : vector<2x1024xi1>, vector<2x1024xf32>
    %cst_5 = arith.constant 1.000000e+00 : f32
    %cst_6 = arith.constant 0.000000e+00 : f32
    %8 = vector.broadcast %cst_5 : f32 to vector<2x1024xf32>
    %9 = vector.broadcast %cst_6 : f32 to vector<2x1024xf32>
    %10 = arith.select %5, %8, %9 : vector<2x1024xi1>, vector<2x1024xf32>
    %11 = vector.shape_cast %10 : vector<2x1024xf32> to vector<1x2x1024xf32>
    %cst_7 = arith.constant dense<0.000000e+00> : vector<1xf32>
    %12 = vector.multi_reduction <add>, %11, %cst_7 [1, 2] : vector<1x2x1024xf32> to vector<1xf32>
    %13 = vector.shape_cast %12 : vector<1xf32> to vector<1x1x1xf32>
    %14 = vector.extract %13[0, 0, 0] : f32 from vector<1x1x1xf32>
    %15 = vector.shape_cast %7 : vector<2x1024xf32> to vector<1x2x1024xf32>
    %cst_8 = arith.constant dense<0.000000e+00> : vector<1xf32>
    %16 = vector.multi_reduction <add>, %15, %cst_8 [1, 2] : vector<1x2x1024xf32> to vector<1xf32>
    %17 = vector.shape_cast %16 : vector<1xf32> to vector<1x1x1xf32>
    %18 = vector.extract %17[0, 0, 0] : f32 from vector<1x1x1xf32>
    %19 = arith.mulf %7, %7 : vector<2x1024xf32>
    %20 = vector.shape_cast %19 : vector<2x1024xf32> to vector<1x2x1024xf32>
    %cst_9 = arith.constant dense<0.000000e+00> : vector<1xf32>
    %21 = vector.multi_reduction <add>, %20, %cst_9 [1, 2] : vector<1x2x1024xf32> to vector<1xf32>
    %22 = vector.shape_cast %21 : vector<1xf32> to vector<1x1x1xf32>
    %23 = vector.extract %22[0, 0, 0] : f32 from vector<1x1x1xf32>
    %c2048_i32 = arith.constant 2048 : i32
    %24 = arith.muli %arg0, %c2048_i32 : i32
    %25 = tpu.iota {dimensions = array<i32: 0>} : vector<2x1024xi32>
    %26 = tpu.iota {dimensions = array<i32: 1>} : vector<2x1024xi32>
    %c1024_i32 = arith.constant 1024 : i32
    %27 = vector.broadcast %c1024_i32 : i32 to vector<2x1024xi32>
    %28 = arith.muli %25, %27 : vector<2x1024xi32>
    %29 = vector.broadcast %24 : i32 to vector<2x1024xi32>
    %30 = arith.addi %29, %28 : vector<2x1024xi32>
    %31 = arith.addi %30, %26 : vector<2x1024xi32>
    %c1024_i32_10 = arith.constant 1024 : i32
    %32 = vector.broadcast %c1024_i32_10 : i32 to vector<2x1024xi32>
    %33 = arith.cmpi slt, %31, %32 : vector<2x1024xi32>
    %cst_11 = arith.constant -1.000000e+00 : f32
    %34 = vector.broadcast %cst_11 : f32 to vector<2x1024xf32>
    %35 = arith.cmpf ogt, %2, %34 : vector<2x1024xf32>
    %36 = arith.andi %33, %35 : vector<2x1024xi1>
    %cst_12 = arith.constant 1.000000e+00 : f32
    %cst_13 = arith.constant 0.000000e+00 : f32
    %37 = vector.broadcast %cst_12 : f32 to vector<2x1024xf32>
    %38 = vector.broadcast %cst_13 : f32 to vector<2x1024xf32>
    %39 = arith.select %36, %37, %38 : vector<2x1024xi1>, vector<2x1024xf32>
    %40 = vector.shape_cast %39 : vector<2x1024xf32> to vector<1x2x1024xf32>
    %cst_14 = arith.constant dense<0.000000e+00> : vector<1xf32>
    %41 = vector.multi_reduction <add>, %40, %cst_14 [1, 2] : vector<1x2x1024xf32> to vector<1xf32>
    %42 = vector.shape_cast %41 : vector<1xf32> to vector<1x1x1xf32>
    %43 = vector.extract %42[0, 0, 0] : f32 from vector<1x1x1xf32>
    %44 = tpu.iota {dimensions = array<i32: 1>} : vector<8x128xi32>
    %c0_i32 = arith.constant 0 : i32
    %45 = vector.broadcast %c0_i32 : i32 to vector<8x128xi32>
    %46 = arith.cmpi eq, %44, %45 : vector<8x128xi32>
    %c1_i32 = arith.constant 1 : i32
    %47 = vector.broadcast %c1_i32 : i32 to vector<8x128xi32>
    %48 = arith.cmpi eq, %44, %47 : vector<8x128xi32>
    %c2_i32 = arith.constant 2 : i32
    %49 = vector.broadcast %c2_i32 : i32 to vector<8x128xi32>
    %50 = arith.cmpi eq, %44, %49 : vector<8x128xi32>
    %c3_i32 = arith.constant 3 : i32
    %51 = vector.broadcast %c3_i32 : i32 to vector<8x128xi32>
    %52 = arith.cmpi eq, %44, %51 : vector<8x128xi32>
    %cst_15 = arith.constant 0.000000e+00 : f32
    %53 = vector.broadcast %43 : f32 to vector<8x128xf32>
    %54 = vector.broadcast %cst_15 : f32 to vector<8x128xf32>
    %55 = arith.select %52, %53, %54 : vector<8x128xi1>, vector<8x128xf32>
    %56 = vector.broadcast %23 : f32 to vector<8x128xf32>
    %57 = arith.select %50, %56, %55 : vector<8x128xi1>, vector<8x128xf32>
    %58 = vector.broadcast %18 : f32 to vector<8x128xf32>
    %59 = arith.select %48, %58, %57 : vector<8x128xi1>, vector<8x128xf32>
    %60 = vector.broadcast %14 : f32 to vector<8x128xf32>
    %61 = arith.select %46, %60, %59 : vector<8x128xi1>, vector<8x128xf32>
    %c0_16 = arith.constant 0 : index
    %c0_17 = arith.constant 0 : index
    %62 = vector.load %arg3[%c0_16, %c0_17] : memref<8x128xf32, #tpu.memory_space<vmem>>, vector<8x128xf32>
    tpu.vector_store %arg3[%c0_16, %c0_17], %61 {strides = array<i32>} : memref<8x128xf32, #tpu.memory_space<vmem>>, vector<8x128xf32>,
    return
  }
  func.func @transform_0(%arg0: i32) -> (i32, i32) {
    %c0_i32 = arith.constant 0 : i32
    %c0_i32_0 = arith.constant 0 : i32
    return %arg0, %c0_i32 : i32, i32
  }
  func.func @transform_1(%arg0: i32) -> (i32, i32) {
    %c0_i32 = arith.constant 0 : i32
    %c0_i32_0 = arith.constant 0 : i32
    return %arg0, %c0_i32 : i32, i32
  }
  func.func @transform_2(%arg0: i32) -> (i32, i32) {
    %c0_i32 = arith.constant 0 : i32
    %c0_i32_0 = arith.constant 0 : i32
    return %arg0, %c0_i32 : i32, i32
  }
}

</mosaic_0001>

<llo_original>
// kernel: tpu_custom_call.1
$region0: #{tpu_custom_call.1}
  #allocation0 [shape = 'u32[]', space=smem, size = 0x4, offset = 0x4, fixed_abs, tag = 'smem constant byte address 0x4 - core index']
  #allocation1 [shape = 'u32[72,128]{1,0:T(1,128)}', space=vmem, size = 0x9000, scoped, tag = 'internal scratch']
  %s0 = inlined_call_operand.hbm [shape: f32[2,1024], index: 0, kind: input, shape index: {}]
  %s1 = inlined_call_operand.hbm [shape: f32[2,1024], index: 1, kind: output, shape index: {0}]
  %s2 = inlined_call_operand.hbm [shape: f32[8,128], index: 2, kind: output, shape index: {1}]
  %3 = xla_tuple %s1, %s2
  %s4 = sld [smem:[#allocation0]]
  $region26: #{tpu_custom_call.1} parent=0
    _
  %s6 = ssub.s32 1, %s4
  %s7 = scalar_select 0, %s6, %s4
  $region1: #{tpu_custom_call.1} parent=0
    #allocation2 [shape = 'u8[8192]{0}', space=vmem, size = 0x2000, scoped, tag = 'input window, operand 0, single buffered']
    #allocation3 [shape = 's32[1]{0}', space=sflag, size = 0x4, scoped, tag = 'scoped memory for tpu_custom_call.1']
    #allocation4 [shape = 's32[1]{0}', space=sflag, size = 0x4, scoped, tag = 'scoped memory for tpu_custom_call.1']
    #allocation5 [shape = 'u8[8192]{0}', space=vmem, size = 0x2000, scoped, tag = 'output window, operand 0, single buffered']
    #allocation6 [shape = 'u8[4096]{0}', space=vmem, size = 0x1000, scoped, tag = 'output window, operand 1, single buffered']
    #allocation7 [shape = 's32[1]{0}', space=sflag, size = 0x4, scoped, tag = 'scoped memory for tpu_custom_call.1']
    %8 = vsyncpa [#allocation3], 0
    %9 = vsyncpa [#allocation4], 0
    %10 = vsyncpa [#allocation7], 0
    // Predicated region
    $region2: #{tpu_custom_call.1} parent=1 // pred_check
      _
    $region3: #{tpu_custom_call.1} parent=1 // pred_check_branch
      %12 = sbr.rel (0) target = $region5
    $region4: #{tpu_custom_call.1} parent=1 // pred_region
      %14 = vsyncadd [#allocation3], 0
      %s16 = sshll.u32 %s0, 4
      %s17 = int_to_ptr.hbm [resolvable:$true] %s16
      %s18 = sshll.u32 [#allocation2], 4
      %s19 = int_to_ptr.vmem [resolvable:$true] %s18
      %21 = dma.hbm_to_vmem [thread:$0]  %s17, 256, %s19, [#allocation3]
    $region5: #{tpu_custom_call.1} parent=1 // pred_fallthru
      _
    // Predicated region
    $region6: #{tpu_custom_call.1} parent=1 // pred_check
      _
    $region7: #{tpu_custom_call.1} parent=1 // pred_check_branch
      %23 = sbr.rel (0) target = $region9
    $region8: #{tpu_custom_call.1} parent=1 // pred_region
      %25 = dma.done [#allocation3], 256
    $region9: #{tpu_custom_call.1} parent=1 // pred_fallthru
      _
    %v26 = vld [vmem:[#allocation2] sm:$0xff]
    %v27 = vld [vmem:[#allocation2 + $0x8] sm:$0xff]
    %v28 = vmax.f32 %v26, 0.0
    %v29 = vmax.f32 %v27, 0.0
    %30 = vst [vmem:[#allocation5] sm:$0xff] %v28
    %31 = vst [vmem:[#allocation5 + $0x8] sm:$0xff] %v29
    %vm32 = vcmp.gt.f32.partialorder %v28, 0.0001
    %vm33 = vcmp.gt.f32.partialorder %v29, 0.0001
    %v34 = vsel %vm32, %v28, 0.0
    %v35 = vsel %vm33, %v29, 0.0
    %v36 = vsel %vm32, 1.0, 0.0
    %v37 = vsel %vm33, 1.0, 0.0
    %40 = vst [vmem:[#allocation1] ss:$4 sm:$0xff] %v36
    %s41 = scalar_lea.vmem [#allocation1], 32
    %42 = vst [vmem:[%s41] ss:$4 sm:$0xff] %v37
    %v43 = vld.sshfl [vmem:[#allocation1] sm:$0xff pattern:$0x73625140]
    %v44 = vld.sshfl [vmem:[#allocation1 + $0x8] sm:$0xff pattern:$0x73625140]
    %v45 = vld.sshfl [vmem:[#allocation1 + $0x10] sm:$0xff pattern:$0x73625140]
    %v46 = vld.sshfl [vmem:[#allocation1 + $0x18] sm:$0xff pattern:$0x73625140]
    %v47 = vld.sshfl [vmem:[#allocation1 + $0x20] sm:$0xff pattern:$0x73625140]
    %v48 = vld.sshfl [vmem:[#allocation1 + $0x28] sm:$0xff pattern:$0x73625140]
    %v49 = vld.sshfl [vmem:[#allocation1 + $0x30] sm:$0xff pattern:$0x73625140]
    %v50 = vld.sshfl [vmem:[#allocation1 + $0x38] sm:$0xff pattern:$0x73625140]
    %vm59 = vcmask 1041408
    %v60 = vsel %vm59, %v43, 0.0
    %v61 = vsel %vm59, %v44, 0.0
    %v62 = vadd.f32 %v60, %v61
    %v63 = vsel %vm59, %v45, 0.0
    %v64 = vadd.f32 %v62, %v63
    %v65 = vsel %vm59, %v46, 0.0
    %v66 = vadd.f32 %v64, %v65
    %v67 = vsel %vm59, %v47, 0.0
    %v68 = vadd.f32 %v66, %v67
    %v69 = vsel %vm59, %v48, 0.0
    %v70 = vadd.f32 %v68, %v69
    %v71 = vsel %vm59, %v49, 0.0
    %v72 = vadd.f32 %v70, %v71
    %v73 = vsel %vm59, %v50, 0.0
    %v74 = vadd.f32 %v72, %v73
    %75 = vadd.xlane.f32.xlu0 %v74
    %v76 = vpop.xlane.xlu0 %75
    %v77 = vrot.slane %v76, 4
    %v78 = vadd.f32 %v76, %v77
    %v79 = vrot.slane %v78, 2
    %v80 = vadd.f32 %v78, %v79
    %v81 = vrot.slane %v80, 1
    %v82 = vadd.f32 %v80, %v81
    %s83 = vtos %v82
    %86 = vst [vmem:[#allocation1] ss:$4 sm:$0xff] %v34
    %s87 = scalar_lea.vmem [#allocation1], 32
    %88 = vst [vmem:[%s87] ss:$4 sm:$0xff] %v35
    %v89 = vld.sshfl [vmem:[#allocation1] sm:$0xff pattern:$0x73625140]
    %v90 = vld.sshfl [vmem:[#allocation1 + $0x8] sm:$0xff pattern:$0x73625140]
    %v91 = vld.sshfl [vmem:[#allocation1 + $0x10] sm:$0xff pattern:$0x73625140]
    %v92 = vld.sshfl [vmem:[#allocation1 + $0x18] sm:$0xff pattern:$0x73625140]
    %v93 = vld.sshfl [vmem:[#allocation1 + $0x20] sm:$0xff pattern:$0x73625140]
    %v94 = vld.sshfl [vmem:[#allocation1 + $0x28] sm:$0xff pattern:$0x73625140]
    %v95 = vld.sshfl [vmem:[#allocation1 + $0x30] sm:$0xff pattern:$0x73625140]
    %v96 = vld.sshfl [vmem:[#allocation1 + $0x38] sm:$0xff pattern:$0x73625140]
    %v105 = vsel %vm59, %v89, 0.0
    %v106 = vsel %vm59, %v90, 0.0
    %v107 = vadd.f32 %v105, %v106
    %v108 = vsel %vm59, %v91, 0.0
    %v109 = vadd.f32 %v107, %v108
    %v110 = vsel %vm59, %v92, 0.0
    %v111 = vadd.f32 %v109, %v110
    %v112 = vsel %vm59, %v93, 0.0
    %v113 = vadd.f32 %v111, %v112
    %v114 = vsel %vm59, %v94, 0.0
    %v115 = vadd.f32 %v113, %v114
    %v116 = vsel %vm59, %v95, 0.0
    %v117 = vadd.f32 %v115, %v116
    %v118 = vsel %vm59, %v96, 0.0
    %v119 = vadd.f32 %v117, %v118
    %120 = vadd.xlane.f32.xlu0 %v119
    %v121 = vpop.xlane.xlu0 %120
    %v122 = vrot.slane %v121, 4
    %v123 = vadd.f32 %v121, %v122
    %v124 = vrot.slane %v123, 2
    %v125 = vadd.f32 %v123, %v124
    %v126 = vrot.slane %v125, 1
    %v127 = vadd.f32 %v125, %v126
    %s128 = vtos %v127
    %v129 = vmul.f32 %v34, %v34
    %v130 = vmul.f32 %v35, %v35
    %133 = vst [vmem:[#allocation1] ss:$4 sm:$0xff] %v129
    %s134 = scalar_lea.vmem [#allocation1], 32
    %135 = vst [vmem:[%s134] ss:$4 sm:$0xff] %v130
    %v136 = vld.sshfl [vmem:[#allocation1] sm:$0xff pattern:$0x73625140]
    %v137 = vld.sshfl [vmem:[#allocation1 + $0x8] sm:$0xff pattern:$0x73625140]
    %v138 = vld.sshfl [vmem:[#allocation1 + $0x10] sm:$0xff pattern:$0x73625140]
    %v139 = vld.sshfl [vmem:[#allocation1 + $0x18] sm:$0xff pattern:$0x73625140]
    %v140 = vld.sshfl [vmem:[#allocation1 + $0x20] sm:$0xff pattern:$0x73625140]
    %v141 = vld.sshfl [vmem:[#allocation1 + $0x28] sm:$0xff pattern:$0x73625140]
    %v142 = vld.sshfl [vmem:[#allocation1 + $0x30] sm:$0xff pattern:$0x73625140]
    %v143 = vld.sshfl [vmem:[#allocation1 + $0x38] sm:$0xff pattern:$0x73625140]
    %v152 = vsel %vm59, %v136, 0.0
    %v153 = vsel %vm59, %v137, 0.0
    %v154 = vadd.f32 %v152, %v153
    %v155 = vsel %vm59, %v138, 0.0
    %v156 = vadd.f32 %v154, %v155
    %v157 = vsel %vm59, %v139, 0.0
    %v158 = vadd.f32 %v156, %v157
    %v159 = vsel %vm59, %v140, 0.0
    %v160 = vadd.f32 %v158, %v159
    %v161 = vsel %vm59, %v141, 0.0
    %v162 = vadd.f32 %v160, %v161
    %v163 = vsel %vm59, %v142, 0.0
    %v164 = vadd.f32 %v162, %v163
    %v165 = vsel %vm59, %v143, 0.0
    %v166 = vadd.f32 %v164, %v165
    %167 = vadd.xlane.f32.xlu0 %v166
    %v168 = vpop.xlane.xlu0 %167
    %v169 = vrot.slane %v168, 4
    %v170 = vadd.f32 %v168, %v169
    %v171 = vrot.slane %v170, 2
    %v172 = vadd.f32 %v170, %v171
    %v173 = vrot.slane %v172, 1
    %v174 = vadd.f32 %v172, %v173
    %s175 = vtos %v174
    %s176 = smul.u32 0, 2048
    %v177 = vlaneseq
    %v178 = vshrl.u32 %v177, 7
    %v179 = vlaneseq
    %v180 = vand.u32 %v179, 127
    %v181 = vadd.s32 %v180, 128
    %v182 = vadd.s32 %v180, 256
    %v183 = vadd.s32 %v180, 384
    %v184 = vadd.s32 %v180, 512
    %v185 = vadd.s32 %v180, 640
    %v186 = vadd.s32 %v180, 768
    %v187 = vadd.s32 %v180, 896
    %v188 = vmul.u32 %v178, 1024
    %v189 = vstv %s176
    %v190 = vadd.s32 %v189, %v188
    %v191 = vadd.s32 %v190, %v180
    %v192 = vadd.s32 %v190, %v181
    %v193 = vadd.s32 %v190, %v182
    %v194 = vadd.s32 %v190, %v183
    %v195 = vadd.s32 %v190, %v184
    %v196 = vadd.s32 %v190, %v185
    %v197 = vadd.s32 %v190, %v186
    %v198 = vadd.s32 %v190, %v187
    %vm199 = vcmp.lt.s32.totalorder %v191, 1024
    %vm200 = vcmp.lt.s32.totalorder %v192, 1024
    %vm201 = vcmp.lt.s32.totalorder %v193, 1024
    %vm202 = vcmp.lt.s32.totalorder %v194, 1024
    %vm203 = vcmp.lt.s32.totalorder %v195, 1024
    %vm204 = vcmp.lt.s32.totalorder %v196, 1024
    %vm205 = vcmp.lt.s32.totalorder %v197, 1024
    %vm206 = vcmp.lt.s32.totalorder %v198, 1024
    %vm207 = vcmp.gt.f32.partialorder %v28, -1.0
    %vm208 = vcmp.gt.f32.partialorder %v29, -1.0
    %v209 = vsel %vm207, 1, 0
    %v210 = vsel %vm208, 1, 0
    %211 = vst [vmem:[#allocation1] ss:$4 sm:$0xff] %v209
    %s212 = scalar_lea.vmem [#allocation1], 32
    %213 = vst [vmem:[%s212] ss:$4 sm:$0xff] %v210
    %v214 = vld.sshfl [vmem:[#allocation1] sm:$0xff pattern:$0x73625140]
    %v215 = vld.sshfl [vmem:[#allocation1 + $0x8] sm:$0xff pattern:$0x73625140]
    %v216 = vld.sshfl [vmem:[#allocation1 + $0x10] sm:$0xff pattern:$0x73625140]
    %v217 = vld.sshfl [vmem:[#allocation1 + $0x18] sm:$0xff pattern:$0x73625140]
    %v218 = vld.sshfl [vmem:[#allocation1 + $0x20] sm:$0xff pattern:$0x73625140]
    %v219 = vld.sshfl [vmem:[#allocation1 + $0x28] sm:$0xff pattern:$0x73625140]
    %v220 = vld.sshfl [vmem:[#allocation1 + $0x30] sm:$0xff pattern:$0x73625140]
    %v221 = vld.sshfl [vmem:[#allocation1 + $0x38] sm:$0xff pattern:$0x73625140]
    %vm222 = vcmp.ne.s32.totalorder %v214, 0
    %vm223 = vcmp.ne.s32.totalorder %v215, 0
    %vm224 = vcmp.ne.s32.totalorder %v216, 0
    %vm225 = vcmp.ne.s32.totalorder %v217, 0
    %vm226 = vcmp.ne.s32.totalorder %v218, 0
    %vm227 = vcmp.ne.s32.totalorder %v219, 0
    %vm228 = vcmp.ne.s32.totalorder %v220, 0
    %vm229 = vcmp.ne.s32.totalorder %v221, 0
    %vm230 = vmand %vm199, %vm222
    %vm231 = vmand %vm200, %vm223
    %vm232 = vmand %vm201, %vm224
    %vm233 = vmand %vm202, %vm225
    %vm234 = vmand %vm203, %vm226
    %vm235 = vmand %vm204, %vm227
    %vm236 = vmand %vm205, %vm228
    %vm237 = vmand %vm206, %vm229
    %v238 = vsel %vm230, 1.0, 0.0
    %v239 = vsel %vm231, 1.0, 0.0
    %v240 = vsel %vm232, 1.0, 0.0
    %v241 = vsel %vm233, 1.0, 0.0
    %v242 = vsel %vm234, 1.0, 0.0
    %v243 = vsel %vm235, 1.0, 0.0
    %v244 = vsel %vm236, 1.0, 0.0
    %v245 = vsel %vm237, 1.0, 0.0
    %v246 = vsel %vm59, %v238, 0.0
    %v247 = vsel %vm59, %v239, 0.0
    %v248 = vadd.f32 %v246, %v247
    %v249 = vsel %vm59, %v240, 0.0
    %v250 = vadd.f32 %v248, %v249
    %v251 = vsel %vm59, %v241, 0.0
    %v252 = vadd.f32 %v250, %v251
    %v253 = vsel %vm59, %v242, 0.0
    %v254 = vadd.f32 %v252, %v253
    %v255 = vsel %vm59, %v243, 0.0
    %v256 = vadd.f32 %v254, %v255
    %v257 = vsel %vm59, %v244, 0.0
    %v258 = vadd.f32 %v256, %v257
    %v259 = vsel %vm59, %v245, 0.0
    %v260 = vadd.f32 %v258, %v259
    %261 = vadd.xlane.f32.xlu0 %v260
    %v262 = vpop.xlane.xlu0 %261
    %v263 = vrot.slane %v262, 4
    %v264 = vadd.f32 %v262, %v263
    %v265 = vrot.slane %v264, 2
    %v266 = vadd.f32 %v264, %v265
    %v267 = vrot.slane %v266, 1
    %v268 = vadd.f32 %v266, %v267
    %s269 = vtos %v268
    %vm270 = vcmp.eq.s32.totalorder %v180, 0
    %vm271 = vcmp.eq.s32.totalorder %v180, 1
    %vm272 = vcmp.eq.s32.totalorder %v180, 2
    %vm273 = vcmp.eq.s32.totalorder %v180, 3
    %v274 = vstv %s269
    %v275 = vsel %vm273, %v274, 0.0
    %v276 = vstv %s175
    %v277 = vsel %vm272, %v276, %v275
    %v278 = vstv %s128
    %v279 = vsel %vm271, %v278, %v277
    %v280 = vstv %s83
    %v281 = vsel %vm270, %v280, %v279
    %282 = vst [vmem:[#allocation6] sm:$0xff] %v281
    // Predicated region
    $region10: #{tpu_custom_call.1} parent=1 // pred_check
      _
    $region11: #{tpu_custom_call.1} parent=1 // pred_check_branch
      %284 = sbr.rel (0) target = $region13
    $region12: #{tpu_custom_call.1} parent=1 // pred_region
      %286 = vsyncadd [#allocation4], 0
      %s288 = sshll.u32 [#allocation5], 4
      %s289 = int_to_ptr.vmem [resolvable:$true] %s288
      %s290 = sshll.u32 %s1, 4
      %s291 = int_to_ptr.hbm [resolvable:$true] %s290
      %293 = dma.vmem_to_hbm [thread:$0]  %s289, 256, %s291, [#allocation4]
    $region13: #{tpu_custom_call.1} parent=1 // pred_fallthru
      _
    // Predicated region
    $region14: #{tpu_custom_call.1} parent=1 // pred_check
      _
    $region15: #{tpu_custom_call.1} parent=1 // pred_check_branch
      %295 = sbr.rel (0) target = $region17
    $region16: #{tpu_custom_call.1} parent=1 // pred_region
      %297 = vsyncadd [#allocation7], 0
      %s299 = sshll.u32 [#allocation6], 4
      %s300 = int_to_ptr.vmem [resolvable:$true] %s299
      %s301 = sshll.u32 %s2, 4
      %s302 = int_to_ptr.hbm [resolvable:$true] %s301
      %304 = dma.vmem_to_hbm [thread:$0]  %s300, 128, %s302, [#allocation7]
    $region17: #{tpu_custom_call.1} parent=1 // pred_fallthru
      _
    // Predicated region
    $region18: #{tpu_custom_call.1} parent=1 // pred_check
      _
    $region19: #{tpu_custom_call.1} parent=1 // pred_check_branch
      %306 = sbr.rel (0) target = $region21
    $region20: #{tpu_custom_call.1} parent=1 // pred_region
      %308 = dma.done [#allocation4], 256
    $region21: #{tpu_custom_call.1} parent=1 // pred_fallthru
      _
    // Predicated region
    $region22: #{tpu_custom_call.1} parent=1 // pred_check
      _
    $region23: #{tpu_custom_call.1} parent=1 // pred_check_branch
      %310 = sbr.rel (0) target = $region25
    $region24: #{tpu_custom_call.1} parent=1 // pred_region
      %312 = dma.done [#allocation7], 128
    $region25: #{tpu_custom_call.1} parent=1 // pred_fallthru
      _
    %313 = vsyncpa [#allocation3], 1
    %314 = vsyncpa [#allocation4], 1
    %315 = vsyncpa [#allocation7], 1

</llo_original>
